<compile_context>
chip_gen: v7x
topology: tpu7x:2x2x1
jax: 0.10.0
libtpu: 0.0.40
codegen_flags: <defaults>
</compile_context>

<pallas_src>
import functools

import jax
import jax.numpy as jnp
from jax.experimental import pallas as pl
from jax.experimental.pallas import tpu as pltpu

N_STATE = 4
N_HIDDEN = 64
N_ACTION = 3
OUT_PAD = 128          # lane-dense padded output width
MAX_TILE_B = 512       # batch tile cap (multiple of 8)


def _round_up(n, m):
    return ((n + m - 1) // m) * m


def _mlp_kernel(x_ref, w1_ref, b1_ref, w2_ref, b2_ref, o_ref):
    x = x_ref[...]                     # (TILE_B, N_STATE)   f32
    w1 = w1_ref[...]                   # (N_STATE, N_HIDDEN) f32

    # fc1 on the VPU: contraction dim of 4 would waste >96% of the MXU array.
    # h = b1 + sum_k x[:, k] * w1[k, :]   (4 broadcast multiply-adds)
    h = b1_ref[...] + x[:, 0:1] * w1[0:1, :]
    for k in range(1, N_STATE):
        h = h + x[:, k:k + 1] * w1[k:k + 1, :]

    # ReLU
    h = jnp.maximum(h, 0.0)

    # fc2 on the MXU: (TILE_B, 64) @ (64, 128)  -> f32 accumulate.
    out = jnp.dot(h, w2_ref[...], preferred_element_type=jnp.float32)
    o_ref[...] = (out + b2_ref[...]).astype(o_ref.dtype)


def prepare_params(w1, b1, w2, b2):
    """One-time layout prep (call once at init, reuse every forward).

    w1: (64, 4)  PyTorch (out, in)   -> (4, 64)
    b1: (64,)                        -> (1, 64)
    w2: (3, 64)  PyTorch (out, in)   -> (64, 128) zero-padded on the lane dim
    b2: (3,)                         -> (1, 128)  zero-padded
    """
    w1_t = jnp.asarray(w1, jnp.float32).T                      # (4, 64)
    b1_2d = jnp.asarray(b1, jnp.float32).reshape(1, N_HIDDEN)  # (1, 64)

    w2_t = jnp.asarray(w2, jnp.float32).T                      # (64, 3)
    w2_pad = jnp.zeros((N_HIDDEN, OUT_PAD), jnp.float32)
    w2_pad = w2_pad.at[:, :N_ACTION].set(w2_t)                 # (64, 128)

    b2_pad = jnp.zeros((1, OUT_PAD), jnp.float32)
    b2_pad = b2_pad.at[0, :N_ACTION].set(jnp.asarray(b2, jnp.float32))  # (1, 128)
    return w1_t, b1_2d, w2_pad, b2_pad


@functools.partial(jax.jit, static_argnames=())
def linear_net_forward(x, w1_t, b1_2d, w2_pad, b2_pad):
    """Forward pass. x: (B, N_STATE) f32. Returns (B, N_ACTION) f32."""
    B = x.shape[0]

    # Pick a batch tile: multiple of 8, capped at MAX_TILE_B.
    tile_b = min(MAX_TILE_B, _round_up(max(B, 1), 8))
    padded_b = _round_up(B, tile_b)
    if padded_b != B:
        x = jnp.pad(x, ((0, padded_b - B), (0, 0)))

    grid = (padded_b // tile_b,)

    # VMEM budget: double-buffered x + out tiles, the hidden tile, and the
    # (tiny) weights — plus generous headroom.
    tile_bytes = 4 * tile_b * (N_STATE + N_HIDDEN + OUT_PAD)
    vmem_limit = min(max(4 * tile_bytes + (2 << 20), 4 << 20), 32 << 20)

    out_padded = pl.pallas_call(
        _mlp_kernel,
        out_shape=jax.ShapeDtypeStruct((padded_b, OUT_PAD), jnp.float32),
        grid_spec=pltpu.PrefetchScalarGridSpec(
            num_scalar_prefetch=0,
            grid=grid,
            in_specs=[
                pl.BlockSpec((tile_b, N_STATE), lambda i: (i, 0)),
                pl.BlockSpec((N_STATE, N_HIDDEN), lambda i: (0, 0)),
                pl.BlockSpec((1, N_HIDDEN), lambda i: (0, 0)),
                pl.BlockSpec((N_HIDDEN, OUT_PAD), lambda i: (0, 0)),
                pl.BlockSpec((1, OUT_PAD), lambda i: (0, 0)),
            ],
            out_specs=pl.BlockSpec((tile_b, OUT_PAD), lambda i: (i, 0)),
        ),
        compiler_params=pltpu.CompilerParams(
            dimension_semantics=("parallel",),
            vmem_limit_bytes=vmem_limit,
        ),
    )(x, w1_t, b1_2d, w2_pad, b2_pad)

    return out_padded[:B, :N_ACTION]


def init_params(key):
    """Mirror the PyTorch init: weights ~ N(0, 0.1),
    biases ~ U(-1/sqrt(fan_in), 1/sqrt(fan_in)) (nn.Linear default)."""
    k1, k2, k3, k4 = jax.random.split(key, 4)
    w1 = 0.1 * jax.random.normal(k1, (N_HIDDEN, N_STATE), dtype=jnp.float32)
    bound1 = 1.0 / jnp.sqrt(N_STATE)
    b1 = jax.random.uniform(k2, (N_HIDDEN,), minval=-bound1, maxval=bound1,
                            dtype=jnp.float32)
    w2 = 0.1 * jax.random.normal(k3, (N_ACTION, N_HIDDEN), dtype=jnp.float32)
    bound2 = 1.0 / jnp.sqrt(N_HIDDEN)
    b2 = jax.random.uniform(k4, (N_ACTION,), minval=-bound2, maxval=bound2,
                            dtype=jnp.float32)
    return w1, b1, w2, b2


def _reference(x, w1, b1, w2, b2):
    return jnp.maximum(x @ w1.T + b1, 0.0) @ w2.T + b2


if __name__ == "__main__":
    key = jax.random.PRNGKey(0)
    k_params, k_x1, k_x2 = jax.random.split(key, 3)

    w1, b1, w2, b2 = init_params(k_params)
    params = prepare_params(w1, b1, w2, b2)   # hoisted layout prep (once)

    # Small acting-path batch (as in the module's typical use).
    batch = 2
    x_small = jax.random.normal(k_x1, (batch, N_STATE), dtype=jnp.float32)
    out_small = jax.block_until_ready(linear_net_forward(x_small, *params))
    ref_small = _reference(x_small, w1, b1, w2, b2)
    assert out_small.shape == (batch, N_ACTION)
    assert jnp.allclose(out_small, ref_small, atol=1e-5, rtol=1e-5)

    # Larger, ragged batch to exercise the batch grid + padding path.
    big_batch = 300
    x_big = jax.random.normal(k_x2, (big_batch, N_STATE), dtype=jnp.float32)
    out_big = jax.block_until_ready(linear_net_forward(x_big, *params))
    ref_big = _reference(x_big, w1, b1, w2, b2)
    assert out_big.shape == (big_batch, N_ACTION)
    assert jnp.allclose(out_big, ref_big, atol=1e-5, rtol=1e-5)

    print("KERNEL_OK")
</pallas_src>

<mosaic_0001>
module attributes {stable_mosaic.version = 11 : i64} {
  func.func @_mlp_kernel(%arg0: i32, %arg1: memref<8x4xf32, #tpu.memory_space<vmem>>, %arg2: memref<4x64xf32, #tpu.memory_space<vmem>>, %arg3: memref<1x64xf32, #tpu.memory_space<vmem>>, %arg4: memref<64x128xf32, #tpu.memory_space<vmem>>, %arg5: memref<1x128xf32, #tpu.memory_space<vmem>>, %arg6: memref<8x128xf32, #tpu.memory_space<vmem>>) attributes {dimension_semantics = [#tpu.dimension_semantics<parallel>], iteration_bounds = array<i64: 1>, scalar_prefetch = 0 : i64, scratch_operands = 0 : i64, tpu.core_type = #tpu.core_type<tc>, window_params = [{transform_indices = @transform_0, window_bounds = array<i64: 8, 4>}, {pipeline_mode = #tpu.pipeline_mode<synchronous>, transform_indices = @transform_1, window_bounds = array<i64: 4, 64>}, {pipeline_mode = #tpu.pipeline_mode<synchronous>, transform_indices = @transform_2, window_bounds = array<i64: 1, 64>}, {pipeline_mode = #tpu.pipeline_mode<synchronous>, transform_indices = @transform_3, window_bounds = array<i64: 64, 128>}, {pipeline_mode = #tpu.pipeline_mode<synchronous>, transform_indices = @transform_4, window_bounds = array<i64: 1, 128>}, {transform_indices = @transform_5, window_bounds = array<i64: 8, 128>}]} {
    %c0 = arith.constant 0 : index
    %c0_0 = arith.constant 0 : index
    %0 = vector.load %arg1[%c0, %c0_0] : memref<8x4xf32, #tpu.memory_space<vmem>>, vector<8x4xf32>
    %c0_1 = arith.constant 0 : index
    %c0_2 = arith.constant 0 : index
    %1 = vector.load %arg2[%c0_1, %c0_2] : memref<4x64xf32, #tpu.memory_space<vmem>>, vector<4x64xf32>
    %c0_3 = arith.constant 0 : index
    %c0_4 = arith.constant 0 : index
    %2 = vector.load %arg3[%c0_3, %c0_4] : memref<1x64xf32, #tpu.memory_space<vmem>>, vector<1x64xf32>
    %3 = vector.extract_strided_slice %0 {offsets = [0, 0], sizes = [8, 1], strides = [1, 1]} : vector<8x4xf32> to vector<8x1xf32>
    %4 = vector.extract_strided_slice %1 {offsets = [0, 0], sizes = [1, 64], strides = [1, 1]} : vector<4x64xf32> to vector<1x64xf32>
    %5 = vector.broadcast %3 : vector<8x1xf32> to vector<8x64xf32>
    %6 = vector.broadcast %4 : vector<1x64xf32> to vector<8x64xf32>
    %7 = arith.mulf %5, %6 : vector<8x64xf32>
    %8 = vector.broadcast %2 : vector<1x64xf32> to vector<8x64xf32>
    %9 = arith.addf %8, %7 : vector<8x64xf32>
    %10 = vector.extract_strided_slice %0 {offsets = [0, 1], sizes = [8, 1], strides = [1, 1]} : vector<8x4xf32> to vector<8x1xf32>
    %11 = vector.extract_strided_slice %1 {offsets = [1, 0], sizes = [1, 64], strides = [1, 1]} : vector<4x64xf32> to vector<1x64xf32>
    %12 = vector.broadcast %10 : vector<8x1xf32> to vector<8x64xf32>
    %13 = vector.broadcast %11 : vector<1x64xf32> to vector<8x64xf32>
    %14 = arith.mulf %12, %13 : vector<8x64xf32>
    %15 = arith.addf %9, %14 : vector<8x64xf32>
    %16 = vector.extract_strided_slice %0 {offsets = [0, 2], sizes = [8, 1], strides = [1, 1]} : vector<8x4xf32> to vector<8x1xf32>
    %17 = vector.extract_strided_slice %1 {offsets = [2, 0], sizes = [1, 64], strides = [1, 1]} : vector<4x64xf32> to vector<1x64xf32>
    %18 = vector.broadcast %16 : vector<8x1xf32> to vector<8x64xf32>
    %19 = vector.broadcast %17 : vector<1x64xf32> to vector<8x64xf32>
    %20 = arith.mulf %18, %19 : vector<8x64xf32>
    %21 = arith.addf %15, %20 : vector<8x64xf32>
    %22 = vector.extract_strided_slice %0 {offsets = [0, 3], sizes = [8, 1], strides = [1, 1]} : vector<8x4xf32> to vector<8x1xf32>
    %23 = vector.extract_strided_slice %1 {offsets = [3, 0], sizes = [1, 64], strides = [1, 1]} : vector<4x64xf32> to vector<1x64xf32>
    %24 = vector.broadcast %22 : vector<8x1xf32> to vector<8x64xf32>
    %25 = vector.broadcast %23 : vector<1x64xf32> to vector<8x64xf32>
    %26 = arith.mulf %24, %25 : vector<8x64xf32>
    %27 = arith.addf %21, %26 : vector<8x64xf32>
    %cst = arith.constant 0.000000e+00 : f32
    %28 = vector.broadcast %cst : f32 to vector<8x64xf32>
    %29 = arith.maximumf %27, %28 : vector<8x64xf32>
    %c0_5 = arith.constant 0 : index
    %c0_6 = arith.constant 0 : index
    %30 = vector.load %arg4[%c0_5, %c0_6] : memref<64x128xf32, #tpu.memory_space<vmem>>, vector<64x128xf32>
    %cst_7 = arith.constant dense<0.000000e+00> : vector<8x128xf32>
    %31 = tpu.matmul %29, %30, %cst_7 {dimension_numbers = #tpu.dot_dimension_numbers<[1], [0], [0], [1], [0, 0, 1, 1], [], []>} : vector<8x64xf32>, vector<64x128xf32>, vector<8x128xf32> -> vector<8x128xf32>
    %c0_8 = arith.constant 0 : index
    %c0_9 = arith.constant 0 : index
    %32 = vector.load %arg5[%c0_8, %c0_9] : memref<1x128xf32, #tpu.memory_space<vmem>>, vector<1x128xf32>
    %33 = vector.broadcast %32 : vector<1x128xf32> to vector<8x128xf32>
    %34 = arith.addf %31, %33 : vector<8x128xf32>
    %c0_10 = arith.constant 0 : index
    %c0_11 = arith.constant 0 : index
    %35 = vector.load %arg6[%c0_10, %c0_11] : memref<8x128xf32, #tpu.memory_space<vmem>>, vector<8x128xf32>
    tpu.vector_store %arg6[%c0_10, %c0_11], %34 {strides = array<i32>} : memref<8x128xf32, #tpu.memory_space<vmem>>, vector<8x128xf32>,
    return
  }
  func.func @transform_0(%arg0: i32) -> (i32, i32) {
    %c0_i32 = arith.constant 0 : i32
    %c0_i32_0 = arith.constant 0 : i32
    return %arg0, %c0_i32 : i32, i32
  }
  func.func @transform_1(%arg0: i32) -> (i32, i32) {
    %c0_i32 = arith.constant 0 : i32
    %c0_i32_0 = arith.constant 0 : i32
    %c0_i32_1 = arith.constant 0 : i32
    return %c0_i32, %c0_i32_0 : i32, i32
  }
  func.func @transform_2(%arg0: i32) -> (i32, i32) {
    %c0_i32 = arith.constant 0 : i32
    %c0_i32_0 = arith.constant 0 : i32
    %c0_i32_1 = arith.constant 0 : i32
    return %c0_i32, %c0_i32_0 : i32, i32
  }
  func.func @transform_3(%arg0: i32) -> (i32, i32) {
    %c0_i32 = arith.constant 0 : i32
    %c0_i32_0 = arith.constant 0 : i32
    %c0_i32_1 = arith.constant 0 : i32
    return %c0_i32, %c0_i32_0 : i32, i32
  }
  func.func @transform_4(%arg0: i32) -> (i32, i32) {
    %c0_i32 = arith.constant 0 : i32
    %c0_i32_0 = arith.constant 0 : i32
    %c0_i32_1 = arith.constant 0 : i32
    return %c0_i32, %c0_i32_0 : i32, i32
  }
  func.func @transform_5(%arg0: i32) -> (i32, i32) {
    %c0_i32 = arith.constant 0 : i32
    %c0_i32_0 = arith.constant 0 : i32
    return %arg0, %c0_i32 : i32, i32
  }
}

</mosaic_0001>

<llo_original>
// kernel: linear_net_forward.1
$region0: #{linear_net_forward.1}
  #allocation0 [shape = 'u32[]', space=smem, size = 0x4, offset = 0x4, fixed_abs, tag = 'smem constant byte address 0x4 - core index']
  #allocation1 [shape = 'u32[144,128]{1,0:T(1,128)}', space=vmem, size = 0x12000, scoped, tag = 'internal scratch']
  %s0 = inlined_call_operand.vmem [shape: f32[8,4], index: 0, kind: input, shape index: {}]
  %s1 = inlined_call_operand.vmem [shape: f32[4,64], index: 1, kind: input, shape index: {}]
  %s2 = inlined_call_operand.vmem [shape: f32[1,64], index: 2, kind: input, shape index: {}]
  %s3 = inlined_call_operand.hbm [shape: f32[64,128], index: 3, kind: input, shape index: {}]
  %s4 = inlined_call_operand.vmem [shape: f32[1,128], index: 4, kind: input, shape index: {}]
  %s5 = inlined_call_operand.vmem [shape: f32[8,128], index: 5, kind: output, shape index: {}]
  %s6 = sld [smem:[#allocation0]]
  $region34: #{linear_net_forward.1} parent=0
    _
  %s8 = ssub.s32 1, %s6
  %s9 = scalar_select 0, %s8, %s6
  $region1: #{linear_net_forward.1} parent=0
    #allocation2 [shape = 'u8[32768]{0}', space=vmem, size = 0x8000, scoped, tag = 'input window, operand 3, single buffered']
    #allocation3 [shape = 's32[1]{0}', space=sflag, size = 0x4, scoped, tag = 'scoped memory for linear_net_forward.1']
    %10 = vsyncpa [#allocation3], 0
    // Predicated region
    $region2: #{linear_net_forward.1} parent=1 // pred_check
      _
    $region3: #{linear_net_forward.1} parent=1 // pred_check_branch
      %12 = sbr.rel (0) target = $region5
    $region4: #{linear_net_forward.1} parent=1 // pred_region
      _
    $region5: #{linear_net_forward.1} parent=1 // pred_fallthru
      _
    // Predicated region
    $region6: #{linear_net_forward.1} parent=1 // pred_check
      _
    $region7: #{linear_net_forward.1} parent=1 // pred_check_branch
      %14 = sbr.rel (0) target = $region9
    $region8: #{linear_net_forward.1} parent=1 // pred_region
      _
    $region9: #{linear_net_forward.1} parent=1 // pred_fallthru
      _
    // Predicated region
    $region10: #{linear_net_forward.1} parent=1 // pred_check
      _
    $region11: #{linear_net_forward.1} parent=1 // pred_check_branch
      %16 = sbr.rel (0) target = $region13
    $region12: #{linear_net_forward.1} parent=1 // pred_region
      _
    $region13: #{linear_net_forward.1} parent=1 // pred_fallthru
      _
    // Predicated region
    $region14: #{linear_net_forward.1} parent=1 // pred_check
      _
    $region15: #{linear_net_forward.1} parent=1 // pred_check_branch
      %18 = sbr.rel (0) target = $region17
    $region16: #{linear_net_forward.1} parent=1 // pred_region
      %s20 = ssub.s32 1024, 1024
      %21 = vsyncadd [#allocation3], %s20
      %s22 = sshll.u32 [#allocation2], 4
      %s23 = int_to_ptr.vmem [resolvable:$true] %s22
      %28 = dma.hbm_to_vmem [thread:$0]  %s3, 1024, %s23, [#allocation3], 128, 128, 8
    $region17: #{linear_net_forward.1} parent=1 // pred_fallthru
      _
    // Predicated region
    $region18: #{linear_net_forward.1} parent=1 // pred_check
      _
    $region19: #{linear_net_forward.1} parent=1 // pred_check_branch
      %30 = sbr.rel (0) target = $region21
    $region20: #{linear_net_forward.1} parent=1 // pred_region
      _
    $region21: #{linear_net_forward.1} parent=1 // pred_fallthru
      _
    // Predicated region
    $region22: #{linear_net_forward.1} parent=1 // pred_check
      _
    $region23: #{linear_net_forward.1} parent=1 // pred_check_branch
      %32 = sbr.rel (0) target = $region25
    $region24: #{linear_net_forward.1} parent=1 // pred_region
      %33 = dma.done [#allocation3], 1024
    $region25: #{linear_net_forward.1} parent=1 // pred_fallthru
      _
    %v34 = vld [vmem:[%s0] sm:$0xff]
    %v35 = vld [vmem:[%s1] sm:$0xf]
    %v36 = vld [vmem:[%s2] sm:$0x1]
    %38 = vset.pattern.permute.xlu0 0
    %39 = vperm.xlu0 %38, %v34
    %v40 = vpop.permute.xlu0 %39
    %v42 = vlaneseq
    %v43 = vshrl.u32 %v42, 7
    %v44 = vsub.s32 0, %v43
    %v45 = vrot.slane %v35, %v44
    %v46 = vmul.f32 %v40, %v45
    %v48 = vlaneseq
    %v49 = vshrl.u32 %v48, 7
    %v50 = vsub.s32 0, %v49
    %v51 = vrot.slane %v36, %v50
    %v53 = vadd.f32 %v51, %v46
    %54 = vset.pattern.permute.xlu0 1
    %55 = vperm.xlu0 %54, %v34
    %v56 = vpop.permute.xlu0 %55
    %v58 = vlaneseq
    %v59 = vshrl.u32 %v58, 7
    %v60 = vsub.s32 1, %v59
    %v61 = vrot.slane %v35, %v60
    %v62 = vmul.f32 %v56, %v61
    %v63 = vadd.f32 %v53, %v62
    %64 = vset.pattern.permute.xlu0 2
    %65 = vperm.xlu0 %64, %v34
    %v66 = vpop.permute.xlu0 %65
    %v68 = vlaneseq
    %v69 = vshrl.u32 %v68, 7
    %v70 = vsub.s32 2, %v69
    %v71 = vrot.slane %v35, %v70
    %v72 = vmul.f32 %v66, %v71
    %v73 = vadd.f32 %v63, %v72
    %74 = vset.pattern.permute.xlu0 3
    %75 = vperm.xlu0 %74, %v34
    %v76 = vpop.permute.xlu0 %75
    %v78 = vlaneseq
    %v79 = vshrl.u32 %v78, 7
    %v80 = vsub.s32 3, %v79
    %v81 = vrot.slane %v35, %v80
    %v82 = vmul.f32 %v76, %v81
    %v83 = vadd.f32 %v73, %v82
    %v84 = vmax.f32 %v83, 0.0
    %v85 = vld [vmem:[#allocation2] sm:$0xff]
    %v86 = vld [vmem:[#allocation2 + $0x8] sm:$0xff]
    %v87 = vld [vmem:[#allocation2 + $0x10] sm:$0xff]
    %v88 = vld [vmem:[#allocation2 + $0x18] sm:$0xff]
    %v89 = vld [vmem:[#allocation2 + $0x20] sm:$0xff]
    %v90 = vld [vmem:[#allocation2 + $0x28] sm:$0xff]
    %v91 = vld [vmem:[#allocation2 + $0x30] sm:$0xff]
    %v92 = vld [vmem:[#allocation2 + $0x38] sm:$0xff]
    %v93 = vld [vmem:[%s4] sm:$0x1]
    %v95 = vlaneseq
    %v96 = vshrl.u32 %v95, 7
    %v97 = vsub.s32 0, %v96
    %v98 = vrot.slane %v93, %v97
    %vm100 = vcmask 523264
    %v102 = vsel %vm100, %v84, 0
    %104 = vmatprep.subr.mxu0 0.0
    %105 = vmatpush1.msra.mxu0 %v85
    %106 = vmatprep.subr.mxu0 0.0
    %107 = vmatpush1.msra.mxu0 %v86
    %108 = vmatprep.subr.mxu0 0.0
    %109 = vmatpush1.msra.mxu0 %v87
    %110 = vmatprep.subr.mxu0 0.0
    %111 = vmatpush1.msra.mxu0 %v88
    %112 = vmatprep.subr.mxu0 0.0
    %113 = vmatpush1.msra.mxu0 %v89
    %114 = vmatprep.subr.mxu0 0.0
    %115 = vmatpush1.msra.mxu0 %v90
    %116 = vmatprep.subr.mxu0 0.0
    %117 = vmatpush1.msra.mxu0 %v91
    %118 = vmatprep.subr.mxu0 0.0
    %119 = vmatpush1.msra.mxu0 %v92
    %120 = vmatprep.subr.mxu0 0.0
    %121 = vmatpush1.msra.mxu0 0.0
    %122 = vmatprep.subr.mxu0 0.0
    %123 = vmatpush1.msra.mxu0 0.0
    %124 = vmatprep.subr.mxu0 0.0
    %125 = vmatpush1.msra.mxu0 0.0
    %126 = vmatprep.subr.mxu0 0.0
    %127 = vmatpush1.msra.mxu0 0.0
    %128 = vmatprep.subr.mxu0 0.0
    %129 = vmatpush1.msra.mxu0 0.0
    %130 = vmatprep.subr.mxu0 0.0
    %131 = vmatpush1.msra.mxu0 0.0
    %132 = vmatprep.subr.mxu0 0.0
    %133 = vmatpush1.msra.mxu0 0.0
    %134 = vmatprep.subr.mxu0 0.0
    %135 = vmatpush1.msra.mxu0 0.0
    %136 = vmatprep.subr.mxu0 0.0
    %137 = vmatpush1.msra.mxu0 0.0
    %138 = vmatprep.subr.mxu0 0.0
    %139 = vmatpush1.msra.mxu0 0.0
    %140 = vmatprep.subr.mxu0 0.0
    %141 = vmatpush1.msra.mxu0 0.0
    %142 = vmatprep.subr.mxu0 0.0
    %143 = vmatpush1.msra.mxu0 0.0
    %144 = vmatprep.subr.mxu0 0.0
    %145 = vmatpush1.msra.mxu0 0.0
    %146 = vmatprep.subr.mxu0 0.0
    %147 = vmatpush1.msra.mxu0 0.0
    %148 = vmatprep.subr.mxu0 0.0
    %149 = vmatpush1.msra.mxu0 0.0
    %150 = vmatprep.subr.mxu0 0.0
    %151 = vmatpush1.msra.mxu0 0.0
    %152 = vmatprep.subr.mxu0 0.0
    %153 = vmatpush1.msra.mxu0 0.0
    %154 = vmatprep.subr.mxu0 0.0
    %155 = vmatpush1.msra.mxu0 0.0
    %156 = vmatprep.subr.mxu0 0.0
    %157 = vmatpush1.msra.mxu0 0.0
    %158 = vmatprep.subr.mxu0 0.0
    %159 = vmatpush1.msra.mxu0 0.0
    %160 = vmatprep.subr.mxu0 0.0
    %161 = vmatpush1.msra.mxu0 0.0
    %162 = vmatprep.subr.mxu0 0.0
    %163 = vmatpush1.msra.mxu0 0.0
    %164 = vmatprep.subr.mxu0 0.0
    %165 = vmatpush1.msra.mxu0 0.0
    %166 = vmatprep.subr.mxu0 0.0
    %167 = vmatpush1.msra.mxu0 0.0
    %168 = vmatprep.mubr.f32.mxu0 0.0
    %169 = vmatmul.mubr.f32.gmra.mrb[0].mxu0 %v102
    %v170 = vpop.f32.mrb[0].mxu0
    %v171 = vadd.f32 %v98, %v170
    %v172 = vpop.f32.mrb[0].mxu0
    %173 = vdwg.mxu0
    %174 = vst [vmem:[%s5] sm:$0xff] %v171
    // Predicated region
    $region26: #{linear_net_forward.1} parent=1 // pred_check
      _
    $region27: #{linear_net_forward.1} parent=1 // pred_check_branch
      %176 = sbr.rel (0) target = $region29
    $region28: #{linear_net_forward.1} parent=1 // pred_region
      _
    $region29: #{linear_net_forward.1} parent=1 // pred_fallthru
      _
    // Predicated region
    $region30: #{linear_net_forward.1} parent=1 // pred_check
      _
    $region31: #{linear_net_forward.1} parent=1 // pred_check_branch
      %178 = sbr.rel (0) target = $region33
    $region32: #{linear_net_forward.1} parent=1 // pred_region
      _
    $region33: #{linear_net_forward.1} parent=1 // pred_fallthru
      _
    %179 = vsyncpa [#allocation3], 1

</llo_original>
